<compile_context>
chip_gen: v7x
topology: tpu7x:2x2x1
jax: 0.10.0
libtpu: 0.0.40
codegen_flags: <defaults>
</compile_context>

<pallas_src>
import functools

import jax
import jax.numpy as jnp
from jax.experimental import pallas as pl
from jax.experimental.pallas import tpu as pltpu

NUM_INPUTS = 11   # HopperEnv observation_space.shape[0]
HIDDEN = 64


def critic_kernel(x_ref, w1_ref, b1_ref, w2_ref, b2_ref, w3_ref, b3_ref, o_ref):
    # x_ref:  [d_pad, TB]  (compute dtype, e.g. bf16)   -- streamed per grid step
    # w1_ref: [64, d_pad]  w2_ref: [64, 64]             -- resident, compute dtype
    # b1_ref, b2_ref, w3_ref: [64, 1] f32 ; b3_ref: (1,1) f32 scalar in SMEM
    # o_ref:  [1, TB] f32  lane-dense value row
    h1 = jnp.tanh(
        jnp.dot(w1_ref[...], x_ref[...], preferred_element_type=jnp.float32)
        + b1_ref[...]
    )                                                              # [64, TB] f32
    h2 = jnp.tanh(
        jnp.dot(w2_ref[...], h1.astype(w2_ref.dtype),
                preferred_element_type=jnp.float32)
        + b2_ref[...]
    )                                                              # [64, TB] f32
    # Value head: broadcast-multiply (VPU) + sublane reduction (XLU), lane-dense.
    v = jnp.sum(h2 * w3_ref[...], axis=0, keepdims=True) + b3_ref[0, 0]  # [1, TB]
    o_ref[...] = v


@functools.partial(jax.jit, static_argnames=("tile_b", "compute_dtype"))
def critic_forward(x, w1, b1, w2, b2, w3, b3, *, tile_b=256,
                   compute_dtype=jnp.bfloat16):
    """x: [B, num_inputs] f32; weights in PyTorch layout (w: [out, in], b: [out])."""
    B, d_in = x.shape
    d_pad = max(8, ((d_in + 7) // 8) * 8)            # sublane-friendly K (11 -> 16)
    b_pad = ((B + tile_b - 1) // tile_b) * tile_b    # pad batch to a tile multiple
    grid = (b_pad // tile_b,)

    # Wrapper-side layout plumbing (cheap; keeps the kernel fully lane-dense).
    x_t = jnp.pad(x, ((0, b_pad - B), (0, d_pad - d_in))).T.astype(compute_dtype)
    w1_p = jnp.pad(w1, ((0, 0), (0, d_pad - d_in))).astype(compute_dtype)
    w2_c = w2.astype(compute_dtype)
    b1_c = b1.reshape(HIDDEN, 1).astype(jnp.float32)
    b2_c = b2.reshape(HIDDEN, 1).astype(jnp.float32)
    w3_c = w3.reshape(HIDDEN, 1).astype(jnp.float32)
    b3_c = jnp.asarray(b3, jnp.float32).reshape(1, 1)

    const = lambda shape: pl.BlockSpec(shape, lambda i: (0, 0))
    out = pl.pallas_call(
        critic_kernel,
        out_shape=jax.ShapeDtypeStruct((1, b_pad), jnp.float32),
        grid=grid,
        in_specs=[
            pl.BlockSpec((d_pad, tile_b), lambda i: (0, i)),    # x^T tile (streamed)
            const((HIDDEN, d_pad)),                             # w1 (resident)
            const((HIDDEN, 1)),                                 # b1
            const((HIDDEN, HIDDEN)),                            # w2
            const((HIDDEN, 1)),                                 # b2
            const((HIDDEN, 1)),                                 # w3 reduction vector
            pl.BlockSpec(memory_space=pltpu.MemorySpace.SMEM),  # b3 scalar
        ],
        out_specs=pl.BlockSpec((1, tile_b), lambda i: (0, i)),
        compiler_params=pltpu.CompilerParams(
            dimension_semantics=("parallel",),
        ),
    )(x_t, w1_p, b1_c, w2_c, b2_c, w3_c, b3_c)

    return out[0, :B].reshape(B, 1)


def init_params(key, num_inputs):
    """PyTorch nn.Linear default init (U[-1/sqrt(fan_in), 1/sqrt(fan_in)]) in
    PyTorch layout (w: [out, in], b: [out]), plus the Critic value_head rescale
    (weight*0.1, bias*0.0)."""
    ks = jax.random.split(key, 6)

    def linear(kw, kb, fan_in, fan_out):
        bound = float(fan_in) ** -0.5
        w = jax.random.uniform(kw, (fan_out, fan_in), jnp.float32, -bound, bound)
        b = jax.random.uniform(kb, (fan_out,), jnp.float32, -bound, bound)
        return w, b

    w1, b1 = linear(ks[0], ks[1], num_inputs, HIDDEN)
    w2, b2 = linear(ks[2], ks[3], HIDDEN, HIDDEN)
    w3, b3 = linear(ks[4], ks[5], HIDDEN, 1)
    w3 = w3 * 0.1          # value_head.weight.data.mul_(0.1)
    b3 = b3 * 0.0          # value_head.bias.data.mul_(0.0)
    return w1, b1, w2, b2, w3, b3


def reference_forward(x, w1, b1, w2, b2, w3, b3, compute_dtype=jnp.bfloat16):
    """Pure-JAX reference mirroring the kernel's mixed precision
    (bf16 MXU inputs, f32 accumulation / tanh / value head)."""
    r = lambda a: a.astype(compute_dtype).astype(jnp.float32)
    h1 = jnp.tanh(r(x) @ r(w1).T + b1)
    h2 = jnp.tanh(r(h1) @ r(w2).T + b2)
    return jnp.sum(h2 * w3.reshape(1, HIDDEN), axis=-1, keepdims=True) + b3


if __name__ == "__main__":
    key = jax.random.PRNGKey(0)
    k_params, k_x1, k_x2 = jax.random.split(key, 3)
    params = init_params(k_params, NUM_INPUTS)

    # Small batch: pads up to one 256-wide tile, grid = (1,).
    x_small = jax.random.normal(k_x1, (8, NUM_INPUTS), jnp.float32)
    out_small = jax.block_until_ready(critic_forward(x_small, *params))
    ref_small = reference_forward(x_small, *params)
    assert out_small.shape == (8, 1)
    assert jnp.allclose(out_small, ref_small, atol=1e-4, rtol=1e-4), \
        "mismatch vs JAX reference (small batch)"

    # Exercise multiple grid steps + batch padding: tile_b=128 -> grid = (2,).
    x_big = jax.random.normal(k_x2, (200, NUM_INPUTS), jnp.float32)
    out_big = jax.block_until_ready(critic_forward(x_big, *params, tile_b=128))
    ref_big = reference_forward(x_big, *params)
    assert out_big.shape == (200, 1)
    assert jnp.allclose(out_big, ref_big, atol=1e-4, rtol=1e-4), \
        "mismatch vs JAX reference (multi-tile batch)"

    print("KERNEL_OK")
</pallas_src>

<mosaic_0001>
module attributes {stable_mosaic.version = 11 : i64} {
  func.func @critic_kernel(%arg0: i32, %arg1: memref<16x256xbf16, #tpu.memory_space<vmem>>, %arg2: memref<64x16xbf16, #tpu.memory_space<vmem>>, %arg3: memref<64x1xf32, #tpu.memory_space<vmem>>, %arg4: memref<64x64xbf16, #tpu.memory_space<vmem>>, %arg5: memref<64x1xf32, #tpu.memory_space<vmem>>, %arg6: memref<64x1xf32, #tpu.memory_space<vmem>>, %arg7: memref<1x1xf32, #tpu.memory_space<smem>>, %arg8: memref<1x256xf32, #tpu.memory_space<vmem>>) attributes {dimension_semantics = [#tpu.dimension_semantics<parallel>], iteration_bounds = array<i64: 1>, scalar_prefetch = 0 : i64, scratch_operands = 0 : i64, tpu.core_type = #tpu.core_type<tc>, window_params = [{transform_indices = @transform_0, window_bounds = array<i64: 16, 256>}, {pipeline_mode = #tpu.pipeline_mode<synchronous>, transform_indices = @transform_1, window_bounds = array<i64: 64, 16>}, {pipeline_mode = #tpu.pipeline_mode<synchronous>, transform_indices = @transform_2, window_bounds = array<i64: 64, 1>}, {pipeline_mode = #tpu.pipeline_mode<synchronous>, transform_indices = @transform_3, window_bounds = array<i64: 64, 64>}, {pipeline_mode = #tpu.pipeline_mode<synchronous>, transform_indices = @transform_4, window_bounds = array<i64: 64, 1>}, {pipeline_mode = #tpu.pipeline_mode<synchronous>, transform_indices = @transform_5, window_bounds = array<i64: 64, 1>}, {transform_indices = @transform_6, window_bounds = array<i64: 1, 1>}, {transform_indices = @transform_7, window_bounds = array<i64: 1, 256>}]} {
    %c0 = arith.constant 0 : index
    %c0_0 = arith.constant 0 : index
    %0 = vector.load %arg2[%c0, %c0_0] : memref<64x16xbf16, #tpu.memory_space<vmem>>, vector<64x16xbf16>
    %c0_1 = arith.constant 0 : index
    %c0_2 = arith.constant 0 : index
    %1 = vector.load %arg1[%c0_1, %c0_2] : memref<16x256xbf16, #tpu.memory_space<vmem>>, vector<16x256xbf16>
    %cst = arith.constant dense<0.000000e+00> : vector<64x256xf32>
    %2 = tpu.matmul %0, %1, %cst {dimension_numbers = #tpu.dot_dimension_numbers<[1], [0], [0], [1], [0, 0, 1, 1], [], []>} : vector<64x16xbf16>, vector<16x256xbf16>, vector<64x256xf32> -> vector<64x256xf32>
    %c0_3 = arith.constant 0 : index
    %c0_4 = arith.constant 0 : index
    %3 = vector.load %arg3[%c0_3, %c0_4] : memref<64x1xf32, #tpu.memory_space<vmem>>, vector<64x1xf32>
    %4 = vector.broadcast %3 : vector<64x1xf32> to vector<64x256xf32>
    %5 = arith.addf %2, %4 : vector<64x256xf32>
    %6 = math.tanh %5 : vector<64x256xf32>
    %c0_5 = arith.constant 0 : index
    %c0_6 = arith.constant 0 : index
    %7 = vector.load %arg4[%c0_5, %c0_6] : memref<64x64xbf16, #tpu.memory_space<vmem>>, vector<64x64xbf16>
    %8 = arith.truncf %6 : vector<64x256xf32> to vector<64x256xbf16>
    %cst_7 = arith.constant dense<0.000000e+00> : vector<64x256xf32>
    %9 = tpu.matmul %7, %8, %cst_7 {dimension_numbers = #tpu.dot_dimension_numbers<[1], [0], [0], [1], [0, 0, 1, 1], [], []>} : vector<64x64xbf16>, vector<64x256xbf16>, vector<64x256xf32> -> vector<64x256xf32>
    %c0_8 = arith.constant 0 : index
    %c0_9 = arith.constant 0 : index
    %10 = vector.load %arg5[%c0_8, %c0_9] : memref<64x1xf32, #tpu.memory_space<vmem>>, vector<64x1xf32>
    %11 = vector.broadcast %10 : vector<64x1xf32> to vector<64x256xf32>
    %12 = arith.addf %9, %11 : vector<64x256xf32>
    %13 = math.tanh %12 : vector<64x256xf32>
    %c0_10 = arith.constant 0 : index
    %c0_11 = arith.constant 0 : index
    %14 = vector.load %arg6[%c0_10, %c0_11] : memref<64x1xf32, #tpu.memory_space<vmem>>, vector<64x1xf32>
    %15 = vector.broadcast %14 : vector<64x1xf32> to vector<64x256xf32>
    %16 = arith.mulf %13, %15 : vector<64x256xf32>
    %cst_12 = arith.constant dense<0.000000e+00> : vector<256xf32>
    %17 = vector.multi_reduction <add>, %16, %cst_12 [0] : vector<64x256xf32> to vector<256xf32>
    %18 = vector.shape_cast %17 : vector<256xf32> to vector<1x256xf32>
    %c0_13 = arith.constant 0 : index
    %c0_14 = arith.constant 0 : index
    %19 = memref.load %arg7[%c0_13, %c0_14] : memref<1x1xf32, #tpu.memory_space<smem>>
    %20 = vector.broadcast %19 : f32 to vector<1x256xf32>
    %21 = arith.addf %18, %20 : vector<1x256xf32>
    %c0_15 = arith.constant 0 : index
    %c0_16 = arith.constant 0 : index
    %22 = vector.load %arg8[%c0_15, %c0_16] : memref<1x256xf32, #tpu.memory_space<vmem>>, vector<1x256xf32>
    tpu.vector_store %arg8[%c0_15, %c0_16], %21 {strides = array<i32>} : memref<1x256xf32, #tpu.memory_space<vmem>>, vector<1x256xf32>,
    return
  }
  func.func @transform_0(%arg0: i32) -> (i32, i32) {
    %c0_i32 = arith.constant 0 : i32
    %c0_i32_0 = arith.constant 0 : i32
    return %c0_i32, %arg0 : i32, i32
  }
  func.func @transform_1(%arg0: i32) -> (i32, i32) {
    %c0_i32 = arith.constant 0 : i32
    %c0_i32_0 = arith.constant 0 : i32
    %c0_i32_1 = arith.constant 0 : i32
    return %c0_i32, %c0_i32_0 : i32, i32
  }
  func.func @transform_2(%arg0: i32) -> (i32, i32) {
    %c0_i32 = arith.constant 0 : i32
    %c0_i32_0 = arith.constant 0 : i32
    %c0_i32_1 = arith.constant 0 : i32
    return %c0_i32, %c0_i32_0 : i32, i32
  }
  func.func @transform_3(%arg0: i32) -> (i32, i32) {
    %c0_i32 = arith.constant 0 : i32
    %c0_i32_0 = arith.constant 0 : i32
    %c0_i32_1 = arith.constant 0 : i32
    return %c0_i32, %c0_i32_0 : i32, i32
  }
  func.func @transform_4(%arg0: i32) -> (i32, i32) {
    %c0_i32 = arith.constant 0 : i32
    %c0_i32_0 = arith.constant 0 : i32
    %c0_i32_1 = arith.constant 0 : i32
    return %c0_i32, %c0_i32_0 : i32, i32
  }
  func.func @transform_5(%arg0: i32) -> (i32, i32) {
    %c0_i32 = arith.constant 0 : i32
    %c0_i32_0 = arith.constant 0 : i32
    %c0_i32_1 = arith.constant 0 : i32
    return %c0_i32, %c0_i32_0 : i32, i32
  }
  func.func @transform_6(%arg0: i32) -> (i32, i32) {
    %c0_i32 = arith.constant 0 : i32
    %c0_i32_0 = arith.constant 0 : i32
    %c0_i32_1 = arith.constant 0 : i32
    return %c0_i32, %c0_i32_0 : i32, i32
  }
  func.func @transform_7(%arg0: i32) -> (i32, i32) {
    %c0_i32 = arith.constant 0 : i32
    %c0_i32_0 = arith.constant 0 : i32
    return %c0_i32, %arg0 : i32, i32
  }
}

</mosaic_0001>

<llo_original>
// kernel: critic_forward.1
$region0: #{critic_forward.1}
  #allocation0 [shape = 'u32[]', space=smem, size = 0x4, offset = 0x4, fixed_abs, tag = 'smem constant byte address 0x4 - core index']
  #allocation1 [shape = 'u32[144,128]{1,0:T(1,128)}', space=vmem, size = 0x12000, scoped, tag = 'internal scratch']
  #allocation2 [shape = 'f32[1,1]{1,0:T(1,128)S(6)}', space=smem, size = 0x200, scoped, tag = 'scoped memory for critic_forward.1']
  %s0 = inlined_call_operand.vmem [shape: bf16[16,256], index: 0, kind: input, shape index: {}]
  %s1 = inlined_call_operand.vmem [shape: bf16[64,16], index: 1, kind: input, shape index: {}]
  %s2 = inlined_call_operand.vmem [shape: f32[64,1], index: 2, kind: input, shape index: {}]
  %s3 = inlined_call_operand.vmem [shape: bf16[64,64], index: 3, kind: input, shape index: {}]
  %s4 = inlined_call_operand.vmem [shape: f32[64,1], index: 4, kind: input, shape index: {}]
  %s5 = inlined_call_operand.vmem [shape: f32[64,1], index: 5, kind: input, shape index: {}]
  %s6 = inlined_call_operand.<no memory space> [shape: f32[1,1], index: 6, kind: input, shape index: {}]
  %s7 = inlined_call_operand.vmem [shape: f32[1,256], index: 7, kind: output, shape index: {}]
  %s8 = sld [smem:[#allocation0]]
  $region38: #{critic_forward.1} parent=0
    _
  %s10 = ssub.s32 1, %s8
  %s11 = scalar_select 0, %s10, %s8
  %12 = sst [smem:[#allocation2]] %s6
  // Predicated region
  $region2: #{critic_forward.1} parent=0 // pred_check
    _
  $region3: #{critic_forward.1} parent=0 // pred_check_branch
    %14 = sbr.rel (0) target = $region5
  $region4: #{critic_forward.1} parent=0 // pred_region
    _
  $region5: #{critic_forward.1} parent=0 // pred_fallthru
    _
  // Predicated region
  $region6: #{critic_forward.1} parent=0 // pred_check
    _
  $region7: #{critic_forward.1} parent=0 // pred_check_branch
    %16 = sbr.rel (0) target = $region9
  $region8: #{critic_forward.1} parent=0 // pred_region
    _
  $region9: #{critic_forward.1} parent=0 // pred_fallthru
    _
  // Predicated region
  $region10: #{critic_forward.1} parent=0 // pred_check
    _
  $region11: #{critic_forward.1} parent=0 // pred_check_branch
    %18 = sbr.rel (0) target = $region13
  $region12: #{critic_forward.1} parent=0 // pred_region
    _
  $region13: #{critic_forward.1} parent=0 // pred_fallthru
    _
  // Predicated region
  $region14: #{critic_forward.1} parent=0 // pred_check
    _
  $region15: #{critic_forward.1} parent=0 // pred_check_branch
    %20 = sbr.rel (0) target = $region17
  $region16: #{critic_forward.1} parent=0 // pred_region
    _
  $region17: #{critic_forward.1} parent=0 // pred_fallthru
    _
  // Predicated region
  $region18: #{critic_forward.1} parent=0 // pred_check
    _
  $region19: #{critic_forward.1} parent=0 // pred_check_branch
    %22 = sbr.rel (0) target = $region21
  $region20: #{critic_forward.1} parent=0 // pred_region
    _
  $region21: #{critic_forward.1} parent=0 // pred_fallthru
    _
  // Predicated region
  $region22: #{critic_forward.1} parent=0 // pred_check
    _
  $region23: #{critic_forward.1} parent=0 // pred_check_branch
    %24 = sbr.rel (0) target = $region25
  $region24: #{critic_forward.1} parent=0 // pred_region
    _
  $region25: #{critic_forward.1} parent=0 // pred_fallthru
    _
  // Predicated region
  $region26: #{critic_forward.1} parent=0 // pred_check
    _
  $region27: #{critic_forward.1} parent=0 // pred_check_branch
    %26 = sbr.rel (0) target = $region29
  $region28: #{critic_forward.1} parent=0 // pred_region
    _
  $region29: #{critic_forward.1} parent=0 // pred_fallthru
    _
  %v28 = vld [vmem:[%s1] sm:$0xf]
  %v29 = vld [vmem:[%s1 + $0x4] sm:$0xf]
  %v30 = vld [vmem:[%s1 + $0x8] sm:$0xf]
  %v31 = vld [vmem:[%s1 + $0xc] sm:$0xf]
  %v32 = vld [vmem:[%s1 + $0x10] sm:$0xf]
  %v33 = vld [vmem:[%s1 + $0x14] sm:$0xf]
  %v34 = vld [vmem:[%s1 + $0x18] sm:$0xf]
  %v35 = vld [vmem:[%s1 + $0x1c] sm:$0xf]
  %v36 = vld [vmem:[%s0] sm:$0xff]
  %v37 = vld [vmem:[%s0 + $0x8] sm:$0xff]
  %v38 = vld [vmem:[%s2] sm:$0xff]
  %v39 = vld [vmem:[%s2 + $0x8] sm:$0xff]
  %v40 = vld [vmem:[%s2 + $0x10] sm:$0xff]
  %v41 = vld [vmem:[%s2 + $0x18] sm:$0xff]
  %v42 = vld [vmem:[%s2 + $0x20] sm:$0xff]
  %v43 = vld [vmem:[%s2 + $0x28] sm:$0xff]
  %v44 = vld [vmem:[%s2 + $0x30] sm:$0xff]
  %v45 = vld [vmem:[%s2 + $0x38] sm:$0xff]
  %47 = vset.pattern.permute.xlu0 0
  %48 = vperm.xlu0 %47, %v38
  %v49 = vpop.permute.xlu0 %48
  %52 = vset.pattern.permute.xlu0 0
  %53 = vperm.xlu0 %52, %v39
  %v54 = vpop.permute.xlu0 %53
  %57 = vset.pattern.permute.xlu0 0
  %58 = vperm.xlu0 %57, %v40
  %v59 = vpop.permute.xlu0 %58
  %62 = vset.pattern.permute.xlu0 0
  %63 = vperm.xlu0 %62, %v41
  %v64 = vpop.permute.xlu0 %63
  %67 = vset.pattern.permute.xlu0 0
  %68 = vperm.xlu0 %67, %v42
  %v69 = vpop.permute.xlu0 %68
  %72 = vset.pattern.permute.xlu0 0
  %73 = vperm.xlu0 %72, %v43
  %v74 = vpop.permute.xlu0 %73
  %77 = vset.pattern.permute.xlu0 0
  %78 = vperm.xlu0 %77, %v44
  %v79 = vpop.permute.xlu0 %78
  %82 = vset.pattern.permute.xlu0 0
  %83 = vperm.xlu0 %82, %v45
  %v84 = vpop.permute.xlu0 %83
  %v94 = vunpack.c.l.b16 %v28
  %v95 = vunpack.c.l.b16 %v29
  %v96 = vunpack.c.l.b16 %v30
  %v97 = vunpack.c.l.b16 %v31
  %v98 = vunpack.c.l.b16 %v32
  %v99 = vunpack.c.l.b16 %v33
  %v100 = vunpack.c.l.b16 %v34
  %v101 = vunpack.c.l.b16 %v35
  %v102 = vpack.c.b16 %v95, %v94
  %v103 = vpack.c.b16 %v97, %v96
  %v104 = vpack.c.b16 %v99, %v98
  %v105 = vpack.c.b16 %v101, %v100
  %v108 = vunpack.c.l.b16 %v36
  %v109 = vunpack.c.h.b16 %v36
  %v110 = vunpack.c.l.b16 %v37
  %v111 = vunpack.c.h.b16 %v37
  %v112 = vpack.c.b16 %v110, %v108
  %v113 = vpack.c.b16 %v111, %v109
  %vm116 = vcmask 130048
  %v118 = vsel %vm116, %v102, 0
  %v121 = vsel %vm116, %v103, 0
  %v124 = vsel %vm116, %v104, 0
  %v127 = vsel %vm116, %v105, 0
  %129 = vmatprep.subr.bf16.mxu0 %v113
  %130 = vmatpush1.bf16.msra.mxu0 %v112
  %131 = vmatprep.subr.bf16.mxu0 0
  %132 = vmatpush1.bf16.msra.mxu0 0
  %133 = vmatprep.subr.bf16.mxu0 0
  %134 = vmatpush1.bf16.msra.mxu0 0
  %135 = vmatprep.subr.bf16.mxu0 0
  %136 = vmatpush1.bf16.msra.mxu0 0
  %137 = vmatprep.subr.bf16.mxu0 0
  %138 = vmatpush1.bf16.msra.mxu0 0
  %139 = vmatprep.subr.bf16.mxu0 0
  %140 = vmatpush1.bf16.msra.mxu0 0
  %141 = vmatprep.subr.bf16.mxu0 0
  %142 = vmatpush1.bf16.msra.mxu0 0
  %143 = vmatprep.subr.bf16.mxu0 0
  %144 = vmatpush1.bf16.msra.mxu0 0
  %145 = vmatprep.subr.bf16.mxu0 0
  %146 = vmatpush1.bf16.msra.mxu0 0
  %147 = vmatprep.subr.bf16.mxu0 0
  %148 = vmatpush1.bf16.msra.mxu0 0
  %149 = vmatprep.subr.bf16.mxu0 0
  %150 = vmatpush1.bf16.msra.mxu0 0
  %151 = vmatprep.subr.bf16.mxu0 0
  %152 = vmatpush1.bf16.msra.mxu0 0
  %153 = vmatprep.subr.bf16.mxu0 0
  %154 = vmatpush1.bf16.msra.mxu0 0
  %155 = vmatprep.subr.bf16.mxu0 0
  %156 = vmatpush1.bf16.msra.mxu0 0
  %157 = vmatprep.subr.bf16.mxu0 0
  %158 = vmatpush1.bf16.msra.mxu0 0
  %159 = vmatprep.subr.bf16.mxu0 0
  %160 = vmatpush1.bf16.msra.mxu0 0
  %161 = vmatprep.mubr.bf16.mxu0 0
  %162 = vmatmul.mubr.bf16.gmra.mrb[0].mxu0 %v118
  %v163 = vpop.f32.mrb[0].mxu0
  %v164 = vadd.f32 %v49, %v163
  %v165 = vpop.f32.mrb[0].mxu0
  %v166 = vadd.f32 %v49, %v165
  %v167 = vpop.f32.mrb[0].mxu0
  %v168 = vadd.f32 %v54, %v167
  %v169 = vpop.f32.mrb[0].mxu0
  %v170 = vadd.f32 %v54, %v169
  %171 = vmatprep.mubr.bf16.mxu0 0
  %172 = vmatmul.mubr.bf16.gmra.mrb[0].mxu0 %v121
  %v173 = vpop.f32.mrb[0].mxu0
  %v174 = vadd.f32 %v59, %v173
  %v175 = vpop.f32.mrb[0].mxu0
  %v176 = vadd.f32 %v59, %v175
  %v177 = vpop.f32.mrb[0].mxu0
  %v178 = vadd.f32 %v64, %v177
  %v179 = vpop.f32.mrb[0].mxu0
  %v180 = vadd.f32 %v64, %v179
  %181 = vmatprep.mubr.bf16.mxu0 0
  %182 = vmatmul.mubr.bf16.gmra.mrb[0].mxu0 %v124
  %v183 = vpop.f32.mrb[0].mxu0
  %v184 = vadd.f32 %v69, %v183
  %v185 = vpop.f32.mrb[0].mxu0
  %v186 = vadd.f32 %v69, %v185
  %v187 = vpop.f32.mrb[0].mxu0
  %v188 = vadd.f32 %v74, %v187
  %v189 = vpop.f32.mrb[0].mxu0
  %v190 = vadd.f32 %v74, %v189
  %191 = vmatprep.mubr.bf16.mxu0 0
  %192 = vmatmul.mubr.bf16.gmra.mrb[0].mxu0 %v127
  %v193 = vpop.f32.mrb[0].mxu0
  %v194 = vadd.f32 %v79, %v193
  %v195 = vpop.f32.mrb[0].mxu0
  %v196 = vadd.f32 %v79, %v195
  %v197 = vpop.f32.mrb[0].mxu0
  %v198 = vadd.f32 %v84, %v197
  %v199 = vpop.f32.mrb[0].mxu0
  %v200 = vadd.f32 %v84, %v199
  %201 = vdwg.mxu0
  %v202 = vtanh.pop %v164
  %v203 = vtanh.pop %v166
  %v204 = vtanh.pop %v168
  %v205 = vtanh.pop %v170
  %v206 = vtanh.pop %v174
  %v207 = vtanh.pop %v176
  %v208 = vtanh.pop %v178
  %v209 = vtanh.pop %v180
  %v210 = vtanh.pop %v184
  %v211 = vtanh.pop %v186
  %v212 = vtanh.pop %v188
  %v213 = vtanh.pop %v190
  %v214 = vtanh.pop %v194
  %v215 = vtanh.pop %v196
  %v216 = vtanh.pop %v198
  %v217 = vtanh.pop %v200
  %v218 = vld [vmem:[%s3] sm:$0xf]
  %v219 = vld [vmem:[%s3 + $0x4] sm:$0xf]
  %v220 = vld [vmem:[%s3 + $0x8] sm:$0xf]
  %v221 = vld [vmem:[%s3 + $0xc] sm:$0xf]
  %v222 = vld [vmem:[%s3 + $0x10] sm:$0xf]
  %v223 = vld [vmem:[%s3 + $0x14] sm:$0xf]
  %v224 = vld [vmem:[%s3 + $0x18] sm:$0xf]
  %v225 = vld [vmem:[%s3 + $0x1c] sm:$0xf]
  %v226 = vpack.c.bf16 %v204, %v202
  %v227 = vpack.c.bf16 %v205, %v203
  %v228 = vpack.c.bf16 %v208, %v206
  %v229 = vpack.c.bf16 %v209, %v207
  %v230 = vpack.c.bf16 %v212, %v210
  %v231 = vpack.c.bf16 %v213, %v211
  %v232 = vpack.c.bf16 %v216, %v214
  %v233 = vpack.c.bf16 %v217, %v215
  %v234 = vld [vmem:[%s4] sm:$0xff]
  %v235 = vld [vmem:[%s4 + $0x8] sm:$0xff]
  %v236 = vld [vmem:[%s4 + $0x10] sm:$0xff]
  %v237 = vld [vmem:[%s4 + $0x18] sm:$0xff]
  %v238 = vld [vmem:[%s4 + $0x20] sm:$0xff]
  %v239 = vld [vmem:[%s4 + $0x28] sm:$0xff]
  %v240 = vld [vmem:[%s4 + $0x30] sm:$0xff]
  %v241 = vld [vmem:[%s4 + $0x38] sm:$0xff]
  %243 = vset.pattern.permute.xlu0 0
  %244 = vperm.xlu0 %243, %v234
  %v245 = vpop.permute.xlu0 %244
  %248 = vset.pattern.permute.xlu0 0
  %249 = vperm.xlu0 %248, %v235
  %v250 = vpop.permute.xlu0 %249
  %253 = vset.pattern.permute.xlu0 0
  %254 = vperm.xlu0 %253, %v236
  %v255 = vpop.permute.xlu0 %254
  %258 = vset.pattern.permute.xlu0 0
  %259 = vperm.xlu0 %258, %v237
  %v260 = vpop.permute.xlu0 %259
  %263 = vset.pattern.permute.xlu0 0
  %264 = vperm.xlu0 %263, %v238
  %v265 = vpop.permute.xlu0 %264
  %268 = vset.pattern.permute.xlu0 0
  %269 = vperm.xlu0 %268, %v239
  %v270 = vpop.permute.xlu0 %269
  %273 = vset.pattern.permute.xlu0 0
  %274 = vperm.xlu0 %273, %v240
  %v275 = vpop.permute.xlu0 %274
  %278 = vset.pattern.permute.xlu0 0
  %279 = vperm.xlu0 %278, %v241
  %v280 = vpop.permute.xlu0 %279
  %v290 = vunpack.c.l.b16 %v218
  %v291 = vunpack.c.l.b16 %v219
  %v292 = vunpack.c.l.b16 %v220
  %v293 = vunpack.c.l.b16 %v221
  %v294 = vunpack.c.l.b16 %v222
  %v295 = vunpack.c.l.b16 %v223
  %v296 = vunpack.c.l.b16 %v224
  %v297 = vunpack.c.l.b16 %v225
  %v298 = vpack.c.b16 %v291, %v290
  %v299 = vpack.c.b16 %v293, %v292
  %v300 = vpack.c.b16 %v295, %v294
  %v301 = vpack.c.b16 %v297, %v296
  %vm302 = vcmask 523264
  %v304 = vsel %vm302, %v298, 0
  %v307 = vsel %vm302, %v299, 0
  %v310 = vsel %vm302, %v300, 0
  %v313 = vsel %vm302, %v301, 0
  %315 = vmatprep.subr.bf16.mxu0 %v227
  %316 = vmatpush1.bf16.msra.mxu0 %v226
  %317 = vmatprep.subr.bf16.mxu0 %v229
  %318 = vmatpush1.bf16.msra.mxu0 %v228
  %319 = vmatprep.subr.bf16.mxu0 %v231
  %320 = vmatpush1.bf16.msra.mxu0 %v230
  %321 = vmatprep.subr.bf16.mxu0 %v233
  %322 = vmatpush1.bf16.msra.mxu0 %v232
  %323 = vmatprep.subr.bf16.mxu0 0
  %324 = vmatpush1.bf16.msra.mxu0 0
  %325 = vmatprep.subr.bf16.mxu0 0
  %326 = vmatpush1.bf16.msra.mxu0 0
  %327 = vmatprep.subr.bf16.mxu0 0
  %328 = vmatpush1.bf16.msra.mxu0 0
  %329 = vmatprep.subr.bf16.mxu0 0
  %330 = vmatpush1.bf16.msra.mxu0 0
  %331 = vmatprep.subr.bf16.mxu0 0
  %332 = vmatpush1.bf16.msra.mxu0 0
  %333 = vmatprep.subr.bf16.mxu0 0
  %334 = vmatpush1.bf16.msra.mxu0 0
  %335 = vmatprep.subr.bf16.mxu0 0
  %336 = vmatpush1.bf16.msra.mxu0 0
  %337 = vmatprep.subr.bf16.mxu0 0
  %338 = vmatpush1.bf16.msra.mxu0 0
  %339 = vmatprep.subr.bf16.mxu0 0
  %340 = vmatpush1.bf16.msra.mxu0 0
  %341 = vmatprep.subr.bf16.mxu0 0
  %342 = vmatpush1.bf16.msra.mxu0 0
  %343 = vmatprep.subr.bf16.mxu0 0
  %344 = vmatpush1.bf16.msra.mxu0 0
  %345 = vmatprep.subr.bf16.mxu0 0
  %346 = vmatpush1.bf16.msra.mxu0 0
  %347 = vmatprep.mubr.bf16.mxu0 0
  %348 = vmatmul.mubr.bf16.gmra.mrb[0].mxu0 %v304
  %v349 = vpop.f32.mrb[0].mxu0
  %v350 = vadd.f32 %v245, %v349
  %v351 = vpop.f32.mrb[0].mxu0
  %v352 = vadd.f32 %v245, %v351
  %v353 = vpop.f32.mrb[0].mxu0
  %v354 = vadd.f32 %v250, %v353
  %v355 = vpop.f32.mrb[0].mxu0
  %v356 = vadd.f32 %v250, %v355
  %357 = vmatprep.mubr.bf16.mxu0 0
  %358 = vmatmul.mubr.bf16.gmra.mrb[0].mxu0 %v307
  %v359 = vpop.f32.mrb[0].mxu0
  %v360 = vadd.f32 %v255, %v359
  %v361 = vpop.f32.mrb[0].mxu0
  %v362 = vadd.f32 %v255, %v361
  %v363 = vpop.f32.mrb[0].mxu0
  %v364 = vadd.f32 %v260, %v363
  %v365 = vpop.f32.mrb[0].mxu0
  %v366 = vadd.f32 %v260, %v365
  %367 = vmatprep.mubr.bf16.mxu0 0
  %368 = vmatmul.mubr.bf16.gmra.mrb[0].mxu0 %v310
  %v369 = vpop.f32.mrb[0].mxu0
  %v370 = vadd.f32 %v265, %v369
  %v371 = vpop.f32.mrb[0].mxu0
  %v372 = vadd.f32 %v265, %v371
  %v373 = vpop.f32.mrb[0].mxu0
  %v374 = vadd.f32 %v270, %v373
  %v375 = vpop.f32.mrb[0].mxu0
  %v376 = vadd.f32 %v270, %v375
  %377 = vmatprep.mubr.bf16.mxu0 0
  %378 = vmatmul.mubr.bf16.gmra.mrb[0].mxu0 %v313
  %v379 = vpop.f32.mrb[0].mxu0
  %v380 = vadd.f32 %v275, %v379
  %v381 = vpop.f32.mrb[0].mxu0
  %v382 = vadd.f32 %v275, %v381
  %v383 = vpop.f32.mrb[0].mxu0
  %v384 = vadd.f32 %v280, %v383
  %v385 = vpop.f32.mrb[0].mxu0
  %v386 = vadd.f32 %v280, %v385
  %387 = vdwg.mxu0
  %v388 = vtanh.pop %v350
  %v389 = vtanh.pop %v352
  %v390 = vtanh.pop %v354
  %v391 = vtanh.pop %v356
  %v392 = vtanh.pop %v360
  %v393 = vtanh.pop %v362
  %v394 = vtanh.pop %v364
  %v395 = vtanh.pop %v366
  %v396 = vtanh.pop %v370
  %v397 = vtanh.pop %v372
  %v398 = vtanh.pop %v374
  %v399 = vtanh.pop %v376
  %v400 = vtanh.pop %v380
  %v401 = vtanh.pop %v382
  %v402 = vtanh.pop %v384
  %v403 = vtanh.pop %v386
  %v404 = vld [vmem:[%s5] sm:$0xff]
  %v405 = vld [vmem:[%s5 + $0x8] sm:$0xff]
  %v406 = vld [vmem:[%s5 + $0x10] sm:$0xff]
  %v407 = vld [vmem:[%s5 + $0x18] sm:$0xff]
  %v408 = vld [vmem:[%s5 + $0x20] sm:$0xff]
  %v409 = vld [vmem:[%s5 + $0x28] sm:$0xff]
  %v410 = vld [vmem:[%s5 + $0x30] sm:$0xff]
  %v411 = vld [vmem:[%s5 + $0x38] sm:$0xff]
  %413 = vset.pattern.permute.xlu0 0
  %414 = vperm.xlu0 %413, %v404
  %v415 = vpop.permute.xlu0 %414
  %418 = vset.pattern.permute.xlu0 0
  %419 = vperm.xlu0 %418, %v405
  %v420 = vpop.permute.xlu0 %419
  %423 = vset.pattern.permute.xlu0 0
  %424 = vperm.xlu0 %423, %v406
  %v425 = vpop.permute.xlu0 %424
  %428 = vset.pattern.permute.xlu0 0
  %429 = vperm.xlu0 %428, %v407
  %v430 = vpop.permute.xlu0 %429
  %433 = vset.pattern.permute.xlu0 0
  %434 = vperm.xlu0 %433, %v408
  %v435 = vpop.permute.xlu0 %434
  %438 = vset.pattern.permute.xlu0 0
  %439 = vperm.xlu0 %438, %v409
  %v440 = vpop.permute.xlu0 %439
  %443 = vset.pattern.permute.xlu0 0
  %444 = vperm.xlu0 %443, %v410
  %v445 = vpop.permute.xlu0 %444
  %448 = vset.pattern.permute.xlu0 0
  %449 = vperm.xlu0 %448, %v411
  %v450 = vpop.permute.xlu0 %449
  %v452 = vmul.f32 %v388, %v415
  %v453 = vmul.f32 %v389, %v415
  %v454 = vmul.f32 %v390, %v420
  %v455 = vmul.f32 %v391, %v420
  %v456 = vmul.f32 %v392, %v425
  %v457 = vmul.f32 %v393, %v425
  %v458 = vmul.f32 %v394, %v430
  %v459 = vmul.f32 %v395, %v430
  %v460 = vmul.f32 %v396, %v435
  %v461 = vmul.f32 %v397, %v435
  %v462 = vmul.f32 %v398, %v440
  %v463 = vmul.f32 %v399, %v440
  %v464 = vmul.f32 %v400, %v445
  %v465 = vmul.f32 %v401, %v445
  %v466 = vmul.f32 %v402, %v450
  %v467 = vmul.f32 %v403, %v450
  %v468 = vadd.f32 %v452, %v454
  %v469 = vadd.f32 %v468, %v456
  %v470 = vadd.f32 %v469, %v458
  %v471 = vadd.f32 %v470, %v460
  %v472 = vadd.f32 %v471, %v462
  %v473 = vadd.f32 %v472, %v464
  %v474 = vadd.f32 %v473, %v466
  %v475 = vrot.slane %v474, 4
  %v476 = vadd.f32 %v474, %v475
  %v477 = vrot.slane %v476, 2
  %v478 = vadd.f32 %v476, %v477
  %v479 = vrot.slane %v478, 1
  %v480 = vadd.f32 %v478, %v479
  %v481 = vadd.f32 %v453, %v455
  %v482 = vadd.f32 %v481, %v457
  %v483 = vadd.f32 %v482, %v459
  %v484 = vadd.f32 %v483, %v461
  %v485 = vadd.f32 %v484, %v463
  %v486 = vadd.f32 %v485, %v465
  %v487 = vadd.f32 %v486, %v467
  %v488 = vrot.slane %v487, 4
  %v489 = vadd.f32 %v487, %v488
  %v490 = vrot.slane %v489, 2
  %v491 = vadd.f32 %v489, %v490
  %v492 = vrot.slane %v491, 1
  %v493 = vadd.f32 %v491, %v492
  %s494 = sld [smem:[#allocation2]]
  %v495 = vstv %s494
  %v496 = vadd.f32 %v480, %v495
  %v497 = vadd.f32 %v493, %v495
  %v500 = vcombine.low %v496, %v497
  %v502 = vunpack.c.l.s4 1966171168
  %v503 = vunpack.c.0.s8 %v502
  %v504 = vlaneseq
  %v505 = vshrl.u32 %v504, 7
  %v506 = vsub.s32 %v503, %v505
  %v507 = vrot.slane %v500, %v506
  %v509 = vunpack.c.l.s4 1966171168
  %v510 = vunpack.c.0.s8 %v509
  %v511 = vlaneseq
  %v512 = vshrl.u32 %v511, 7
  %v513 = vsub.s32 %v510, %v512
  %v514 = vrot.slane %v507, %v513
  %v516 = vlaneseq
  %vm517 = vcmp.ge.s32.totalorder %v516, 0
  %vm518 = vcmp.lt.s32.totalorder %v516, 256
  %vm519 = vmand %vm517, %vm518
  %520 = vst.msk [vmem:[%s7] sm:$0x3] %vm519, %v514
  // Predicated region
  $region30: #{critic_forward.1} parent=0 // pred_check
    _
  $region31: #{critic_forward.1} parent=0 // pred_check_branch
    %522 = sbr.rel (0) target = $region33
  $region32: #{critic_forward.1} parent=0 // pred_region
    _
  $region33: #{critic_forward.1} parent=0 // pred_fallthru
    _
  // Predicated region
  $region34: #{critic_forward.1} parent=0 // pred_check
    _
  $region35: #{critic_forward.1} parent=0 // pred_check_branch
    %524 = sbr.rel (0) target = $region37
  $region36: #{critic_forward.1} parent=0 // pred_region
    _
  $region37: #{critic_forward.1} parent=0 // pred_fallthru
    _

</llo_original>
